<compile_context>
chip_gen: v5e
topology: v5e:2x2
jax: 0.10.0
libtpu: 0.0.40
codegen_flags: <defaults>
</compile_context>

<pallas_src>
import functools

import jax
import jax.numpy as jnp
from jax.experimental import pallas as pl
from jax.experimental.pallas import tpu as pltpu


# ----------------------------------------------------------------------------
# Kernels
# ----------------------------------------------------------------------------
def sfam_fused_kernel(x_ref, w1_ref, b1_ref, w2_ref, b2_ref, o_ref):
    # x_ref: (1, C, HW)  one batch element, channels on sublanes, spatial on lanes
    # w1: (R, C)  b1: (R, 1)  w2: (C, R)  b2: (C, 1)   (natural PyTorch layout)
    # AdaptiveAvgPool2d(1): mean over the spatial (lane) axis -> column vector.
    s = jnp.mean(x_ref[...].astype(jnp.float32), axis=2, keepdims=True)[0]   # (C, 1)
    h = jnp.dot(w1_ref[...], s, preferred_element_type=jnp.float32) + b1_ref[...]
    h = jnp.maximum(h, 0.0)                                                  # (R, 1)
    a = jnp.dot(w2_ref[...], h, preferred_element_type=jnp.float32) + b2_ref[...]
    a = jax.nn.sigmoid(a)                                                    # (C, 1)
    # Re-read x from VMEM (cheap) rather than keeping the tile live in vregs.
    o_ref[...] = (x_ref[...] * a[None, :, :]).astype(o_ref.dtype)


def sfam_attn_kernel(x_ref, w1_ref, b1_ref, w2_ref, b2_ref, a_ref, sum_sc, *, inv_hw):
    # Pass 1 of the HW-tiled path: accumulate the spatial sum, then compute
    # the channel attention at the last HW tile.
    h_idx = pl.program_id(1)

    @pl.when(h_idx == 0)
    def _():
        sum_sc[...] = jnp.zeros_like(sum_sc)

    sum_sc[...] += jnp.sum(x_ref[...].astype(jnp.float32), axis=2, keepdims=True)[0]

    @pl.when(h_idx == pl.num_programs(1) - 1)
    def _():
        s = sum_sc[...] * inv_hw                                             # (C, 1)
        hid = jnp.maximum(
            jnp.dot(w1_ref[...], s, preferred_element_type=jnp.float32) + b1_ref[...],
            0.0)                                                             # (R, 1)
        a = jax.nn.sigmoid(
            jnp.dot(w2_ref[...], hid, preferred_element_type=jnp.float32) + b2_ref[...])
        a_ref[...] = a[None, :, :]                                           # (1, C, 1)


def sfam_mul_kernel(x_ref, a_ref, o_ref):
    # Pass 2 of the HW-tiled path: broadcast multiply (streaming, HBM-bound).
    o_ref[...] = (x_ref[...] * a_ref[...]).astype(o_ref.dtype)


# ----------------------------------------------------------------------------
# Wrappers
# ----------------------------------------------------------------------------
def _pick_hw_tile(hw, max_lanes):
    """Largest multiple of 128 that divides hw and is <= max_lanes (else None)."""
    if hw <= max_lanes:
        return hw
    t = (max_lanes // 128) * 128
    while t >= 128:
        if hw % t == 0:
            return t
        t -= 128
    return None


def _vmem_limit(nbytes):
    """Only raise the scoped-VMEM limit above the compiler default when needed."""
    return int(nbytes) if nbytes > (30 << 20) else None


def sfam_scale(x_nchw, w1, b1, w2, b2, *, vmem_budget_bytes=40 * 1024 * 1024):
    """Apply SFAM channel attention to one scale. x_nchw: (B, C, H, W)."""
    B, C, H, W = x_nchw.shape
    R = w1.shape[0]
    HW = H * W
    x = x_nchw.reshape(B, C, HW)          # free view of NCHW -- no transpose
    b1c = b1.reshape(R, 1)
    b2c = b2.reshape(C, 1)

    dtb = x.dtype.itemsize
    block_bytes = C * HW * dtb
    param_bytes = (2 * C * R + C + R) * 4
    single_pass_vmem = 4 * block_bytes + 2 * param_bytes   # dbl-buffered in + out

    hw_tile = None
    if single_pass_vmem > vmem_budget_bytes:
        max_lanes = max((vmem_budget_bytes - 2 * param_bytes) // (4 * C * dtb), 0)
        hw_tile = _pick_hw_tile(HW, max_lanes)
        # TODO(synk): ragged HW (no multiple-of-128 divisor <= the lane cap)
        # would need masked edge tiles; fall back to one full-HW block then.

    if hw_tile is None or hw_tile == HW:
        # ---- single pass: full (C, HW) slab per batch element --------------
        out = pl.pallas_call(
            sfam_fused_kernel,
            out_shape=jax.ShapeDtypeStruct((B, C, HW), x.dtype),
            grid_spec=pltpu.PrefetchScalarGridSpec(
                num_scalar_prefetch=0,
                grid=(B,),
                in_specs=[
                    pl.BlockSpec((1, C, HW), lambda b: (b, 0, 0)),
                    pl.BlockSpec((R, C), lambda b: (0, 0)),
                    pl.BlockSpec((R, 1), lambda b: (0, 0)),
                    pl.BlockSpec((C, R), lambda b: (0, 0)),
                    pl.BlockSpec((C, 1), lambda b: (0, 0)),
                ],
                out_specs=pl.BlockSpec((1, C, HW), lambda b: (b, 0, 0)),
            ),
            compiler_params=pltpu.CompilerParams(
                dimension_semantics=("parallel",),
                vmem_limit_bytes=_vmem_limit(single_pass_vmem + (4 << 20)),
            ),
            cost_estimate=pl.CostEstimate(
                flops=int(B * (2 * C * HW + 4 * C * R)),
                transcendentals=int(B * C),
                bytes_accessed=int(2 * B * block_bytes + param_bytes),
            ),
        )(x, w1, b1c, w2, b2c)
        return out.reshape(B, C, H, W)

    # ---- two-pass HW-tiled path (large feature maps / small VMEM) ----------
    n_hw = HW // hw_tile
    tile_bytes = C * hw_tile * dtb

    attn = pl.pallas_call(
        functools.partial(sfam_attn_kernel, inv_hw=1.0 / HW),
        out_shape=jax.ShapeDtypeStruct((B, C, 1), jnp.float32),
        grid_spec=pltpu.PrefetchScalarGridSpec(
            num_scalar_prefetch=0,
            grid=(B, n_hw),
            in_specs=[
                pl.BlockSpec((1, C, hw_tile), lambda b, h: (b, 0, h)),
                pl.BlockSpec((R, C), lambda b, h: (0, 0)),
                pl.BlockSpec((R, 1), lambda b, h: (0, 0)),
                pl.BlockSpec((C, R), lambda b, h: (0, 0)),
                pl.BlockSpec((C, 1), lambda b, h: (0, 0)),
            ],
            out_specs=pl.BlockSpec((1, C, 1), lambda b, h: (b, 0, 0)),
            scratch_shapes=[pltpu.VMEM((C, 1), jnp.float32)],
        ),
        compiler_params=pltpu.CompilerParams(
            dimension_semantics=("parallel", "arbitrary"),
            vmem_limit_bytes=_vmem_limit(2 * tile_bytes + 2 * param_bytes + (2 << 20)),
        ),
        cost_estimate=pl.CostEstimate(
            flops=int(B * (C * HW + 4 * C * R)),
            transcendentals=int(B * C),
            bytes_accessed=int(B * block_bytes + param_bytes + B * C * 4),
        ),
    )(x, w1, b1c, w2, b2c)

    out = pl.pallas_call(
        sfam_mul_kernel,
        out_shape=jax.ShapeDtypeStruct((B, C, HW), x.dtype),
        grid_spec=pltpu.PrefetchScalarGridSpec(
            num_scalar_prefetch=0,
            grid=(B, n_hw),
            in_specs=[
                pl.BlockSpec((1, C, hw_tile), lambda b, h: (b, 0, h)),
                pl.BlockSpec((1, C, 1), lambda b, h: (b, 0, 0)),
            ],
            out_specs=pl.BlockSpec((1, C, hw_tile), lambda b, h: (b, 0, h)),
        ),
        compiler_params=pltpu.CompilerParams(
            dimension_semantics=("parallel", "parallel"),
            vmem_limit_bytes=_vmem_limit(4 * tile_bytes + 2 * C * 4 + (2 << 20)),
        ),
        cost_estimate=pl.CostEstimate(
            flops=int(B * C * HW),
            transcendentals=0,
            bytes_accessed=int(2 * B * block_bytes + B * C * 4),
        ),
    )(x, attn)
    return out.reshape(B, C, H, W)


def sfam_forward(xs, params, *, vmem_budget_bytes=40 * 1024 * 1024):
    """xs: list of (B, C, H_i, W_i) arrays. Shared params across scales."""
    w1, b1, w2, b2 = params
    return [sfam_scale(x, w1, b1, w2, b2, vmem_budget_bytes=vmem_budget_bytes)
            for x in xs]


def sfam_reference(xs, params):
    """Pure-JAX reference (mirrors the PyTorch forward)."""
    w1, b1, w2, b2 = params
    outs = []
    for x in xs:
        s = jnp.mean(x, axis=(2, 3))                       # (B, C) avgpool
        h = jnp.maximum(s @ w1.T + b1, 0.0)                # fc1 + relu
        a = jax.nn.sigmoid(h @ w2.T + b2)                  # fc2 + sigmoid
        outs.append(x * a[:, :, None, None])
    return outs


def init_params(key, planes, num_levels):
    C = planes * num_levels
    R = C // 16  # PyTorch code hard-codes //16 (ignores compress_ratio)
    k1, k2, k3, k4 = jax.random.split(key, 4)
    w1 = jax.random.normal(k1, (R, C), jnp.float32) * 0.1   # fc1: Conv2d(C, R, 1)
    b1 = jax.random.normal(k2, (R,), jnp.float32) * 0.1
    w2 = jax.random.normal(k3, (C, R), jnp.float32) * 0.1   # fc2: Conv2d(R, C, 1)
    b2 = jax.random.normal(k4, (C,), jnp.float32) * 0.1
    return w1, b1, w2, b2


if __name__ == "__main__":
    # Small SFAM config: planes=16, num_levels=8 -> C=128 channels, R=8.
    planes, num_levels, num_scales = 16, 8, 3
    B = 2
    C = planes * num_levels

    key = jax.random.PRNGKey(0)
    kp, kx = jax.random.split(key)
    params = init_params(kp, planes, num_levels)

    # Multi-scale pyramid of feature maps (like M2Det): 16x16, 8x8, 4x4.
    spatial = [16, 8, 4]
    xs = []
    for hw in spatial[:num_scales]:
        kx, sub = jax.random.split(kx)
        xs.append(jax.random.normal(sub, (B, C, hw, hw), jnp.float32))

    refs = sfam_reference(xs, params)

    # Default path: fused single-pass kernel per scale.
    outs = sfam_forward(xs, params)
    outs = [jax.block_until_ready(o) for o in outs]
    for o, r in zip(outs, refs):
        assert o.shape == r.shape
        assert jnp.max(jnp.abs(o - r)) < 2e-5

    # Exercise the VMEM-tiled two-pass path (what large M2Det configs hit on
    # v7x / v5e) by forcing a tiny VMEM budget on the largest scale.
    w1, b1, w2, b2 = params
    tiled = jax.block_until_ready(
        sfam_scale(xs[0], w1, b1, w2, b2, vmem_budget_bytes=300 * 1024))
    assert jnp.max(jnp.abs(tiled - refs[0])) < 2e-5

    print("KERNEL_OK")
</pallas_src>

<mosaic_0001>
module attributes {stable_mosaic.version = 11 : i64} {
  func.func @sfam_fused_kernel(%arg0: i32, %arg1: memref<1x128x256xf32, #tpu.memory_space<vmem>>, %arg2: memref<8x128xf32, #tpu.memory_space<vmem>>, %arg3: memref<8x1xf32, #tpu.memory_space<vmem>>, %arg4: memref<128x8xf32, #tpu.memory_space<vmem>>, %arg5: memref<128x1xf32, #tpu.memory_space<vmem>>, %arg6: memref<1x128x256xf32, #tpu.memory_space<vmem>>) attributes {dimension_semantics = [#tpu.dimension_semantics<parallel>], iteration_bounds = array<i64: 2>, scalar_prefetch = 0 : i64, scratch_operands = 0 : i64, tpu.core_type = #tpu.core_type<tc>, window_params = [{transform_indices = @transform_0, window_bounds = array<i64: 1, 128, 256>}, {pipeline_mode = #tpu.pipeline_mode<synchronous>, transform_indices = @transform_1, window_bounds = array<i64: 8, 128>}, {pipeline_mode = #tpu.pipeline_mode<synchronous>, transform_indices = @transform_2, window_bounds = array<i64: 8, 1>}, {pipeline_mode = #tpu.pipeline_mode<synchronous>, transform_indices = @transform_3, window_bounds = array<i64: 128, 8>}, {pipeline_mode = #tpu.pipeline_mode<synchronous>, transform_indices = @transform_4, window_bounds = array<i64: 128, 1>}, {transform_indices = @transform_5, window_bounds = array<i64: 1, 128, 256>}]} {
    %c0 = arith.constant 0 : index
    %c0_0 = arith.constant 0 : index
    %c0_1 = arith.constant 0 : index
    %0 = vector.load %arg1[%c0, %c0_0, %c0_1] : memref<1x128x256xf32, #tpu.memory_space<vmem>>, vector<1x128x256xf32>
    %cst = arith.constant dense<0.000000e+00> : vector<1x128xf32>
    %1 = vector.multi_reduction <add>, %0, %cst [2] : vector<1x128x256xf32> to vector<1x128xf32>
    %2 = vector.shape_cast %1 : vector<1x128xf32> to vector<1x128x1xf32>
    %cst_2 = arith.constant 2.560000e+02 : f32
    %3 = vector.broadcast %cst_2 : f32 to vector<1x128x1xf32>
    %4 = arith.divf %2, %3 : vector<1x128x1xf32>
    %5 = vector.shape_cast %4 : vector<1x128x1xf32> to vector<128x1xf32>
    %c0_3 = arith.constant 0 : index
    %c0_4 = arith.constant 0 : index
    %6 = vector.load %arg2[%c0_3, %c0_4] : memref<8x128xf32, #tpu.memory_space<vmem>>, vector<8x128xf32>
    %cst_5 = arith.constant dense<0.000000e+00> : vector<8x1xf32>
    %7 = tpu.matmul %6, %5, %cst_5 {dimension_numbers = #tpu.dot_dimension_numbers<[1], [0], [0], [1], [0, 0, 1, 1], [], []>} : vector<8x128xf32>, vector<128x1xf32>, vector<8x1xf32> -> vector<8x1xf32>
    %c0_6 = arith.constant 0 : index
    %c0_7 = arith.constant 0 : index
    %8 = vector.load %arg3[%c0_6, %c0_7] : memref<8x1xf32, #tpu.memory_space<vmem>>, vector<8x1xf32>
    %9 = arith.addf %7, %8 : vector<8x1xf32>
    %cst_8 = arith.constant 0.000000e+00 : f32
    %10 = vector.broadcast %cst_8 : f32 to vector<8x1xf32>
    %11 = arith.maximumf %9, %10 : vector<8x1xf32>
    %c0_9 = arith.constant 0 : index
    %c0_10 = arith.constant 0 : index
    %12 = vector.load %arg4[%c0_9, %c0_10] : memref<128x8xf32, #tpu.memory_space<vmem>>, vector<128x8xf32>
    %cst_11 = arith.constant dense<0.000000e+00> : vector<128x1xf32>
    %13 = tpu.matmul %12, %11, %cst_11 {dimension_numbers = #tpu.dot_dimension_numbers<[1], [0], [0], [1], [0, 0, 1, 1], [], []>} : vector<128x8xf32>, vector<8x1xf32>, vector<128x1xf32> -> vector<128x1xf32>
    %c0_12 = arith.constant 0 : index
    %c0_13 = arith.constant 0 : index
    %14 = vector.load %arg5[%c0_12, %c0_13] : memref<128x1xf32, #tpu.memory_space<vmem>>, vector<128x1xf32>
    %15 = arith.addf %13, %14 : vector<128x1xf32>
    %16 = arith.negf %15 : vector<128x1xf32>
    %17 = math.exp %16 : vector<128x1xf32>
    %cst_14 = arith.constant 1.000000e+00 : f32
    %18 = vector.broadcast %cst_14 : f32 to vector<128x1xf32>
    %19 = arith.addf %18, %17 : vector<128x1xf32>
    %20 = arith.divf %18, %19 : vector<128x1xf32>
    %c0_15 = arith.constant 0 : index
    %c0_16 = arith.constant 0 : index
    %c0_17 = arith.constant 0 : index
    %21 = vector.load %arg1[%c0_15, %c0_16, %c0_17] : memref<1x128x256xf32, #tpu.memory_space<vmem>>, vector<1x128x256xf32>
    %22 = vector.shape_cast %20 : vector<128x1xf32> to vector<1x128x1xf32>
    %23 = vector.broadcast %22 : vector<1x128x1xf32> to vector<1x128x256xf32>
    %24 = arith.mulf %21, %23 : vector<1x128x256xf32>
    %c0_18 = arith.constant 0 : index
    %c0_19 = arith.constant 0 : index
    %c0_20 = arith.constant 0 : index
    %25 = vector.load %arg6[%c0_18, %c0_19, %c0_20] : memref<1x128x256xf32, #tpu.memory_space<vmem>>, vector<1x128x256xf32>
    tpu.vector_store %arg6[%c0_18, %c0_19, %c0_20], %24 {strides = array<i32>} : memref<1x128x256xf32, #tpu.memory_space<vmem>>, vector<1x128x256xf32>,
    return
  }
  func.func @transform_0(%arg0: i32) -> (i32, i32, i32) {
    %c0_i32 = arith.constant 0 : i32
    %c0_i32_0 = arith.constant 0 : i32
    %c0_i32_1 = arith.constant 0 : i32
    return %arg0, %c0_i32, %c0_i32_0 : i32, i32, i32
  }
  func.func @transform_1(%arg0: i32) -> (i32, i32) {
    %c0_i32 = arith.constant 0 : i32
    %c0_i32_0 = arith.constant 0 : i32
    %c0_i32_1 = arith.constant 0 : i32
    return %c0_i32, %c0_i32_0 : i32, i32
  }
  func.func @transform_2(%arg0: i32) -> (i32, i32) {
    %c0_i32 = arith.constant 0 : i32
    %c0_i32_0 = arith.constant 0 : i32
    %c0_i32_1 = arith.constant 0 : i32
    return %c0_i32, %c0_i32_0 : i32, i32
  }
  func.func @transform_3(%arg0: i32) -> (i32, i32) {
    %c0_i32 = arith.constant 0 : i32
    %c0_i32_0 = arith.constant 0 : i32
    %c0_i32_1 = arith.constant 0 : i32
    return %c0_i32, %c0_i32_0 : i32, i32
  }
  func.func @transform_4(%arg0: i32) -> (i32, i32) {
    %c0_i32 = arith.constant 0 : i32
    %c0_i32_0 = arith.constant 0 : i32
    %c0_i32_1 = arith.constant 0 : i32
    return %c0_i32, %c0_i32_0 : i32, i32
  }
  func.func @transform_5(%arg0: i32) -> (i32, i32, i32) {
    %c0_i32 = arith.constant 0 : i32
    %c0_i32_0 = arith.constant 0 : i32
    %c0_i32_1 = arith.constant 0 : i32
    return %arg0, %c0_i32, %c0_i32_0 : i32, i32, i32
  }
}

</mosaic_0001>

<llo_original>
// kernel: tpu_custom_call.1
$region0: #{tpu_custom_call.1}
  #allocation0 [shape = 'u32[]', space=smem, size = 0x4, offset = 0x4, fixed_abs, tag = 'smem constant byte address 0x4 - core index']
  #allocation1 [shape = 'u32[72,128]{1,0:T(1,128)}', space=vmem, size = 0x9000, scoped, tag = 'internal scratch']
  %s0 = inlined_call_operand.hbm [shape: f32[2,128,256], index: 0, kind: input, shape index: {}]
  %s1 = inlined_call_operand.vmem [shape: f32[8,128], index: 1, kind: input, shape index: {}]
  %s2 = inlined_call_operand.vmem [shape: f32[8,1], index: 2, kind: input, shape index: {}]
  %s3 = inlined_call_operand.vmem [shape: f32[128,8], index: 3, kind: input, shape index: {}]
  %s4 = inlined_call_operand.vmem [shape: f32[128,1], index: 4, kind: input, shape index: {}]
  %s5 = inlined_call_operand.hbm [shape: f32[2,128,256], index: 5, kind: output, shape index: {}]
  %s6 = sld [smem:[#allocation0]]
  $region57: #{tpu_custom_call.1} parent=0
    _
  %s8 = ssub.s32 1, %s6
  %s9 = scalar_select 0, %s8, %s6
  $region1: #{tpu_custom_call.1} parent=0
    #allocation2 [shape = 'u8[262144]{0}', space=vmem, size = 0x40000, scoped, tag = 'input window, operand 0']
    #allocation3 [shape = 's32[2]{0}', space=sflag, size = 0x8, scoped, tag = 'scoped memory for tpu_custom_call.1']
    #allocation4 [shape = 's32[2]{0}', space=sflag, size = 0x8, scoped, tag = 'scoped memory for tpu_custom_call.1']
    #allocation5 [shape = 'u8[262144]{0}', space=vmem, size = 0x40000, scoped, tag = 'output window, operand 0']
    %10 = vsyncpa [#allocation3], 0
    %s11 = scalar_lea.sflag [#allocation3], 1
    %12 = vsyncpa %s11, 0
    %13 = vsyncpa [#allocation4], 0
    %s14 = scalar_lea.sflag [#allocation4], 1
    %15 = vsyncpa %s14, 0
    loop: start=0, step=1, limit=4
    $region2: #{tpu_custom_call.1} parent=1 // loop_pre_header
      _
    $region3: #{tpu_custom_call.1} parent=1 // loop_header
      %s17 = sphi 0, %s21
      %p18 = scmp.ge.s32.totalorder %s17, 4
      %s27 = sphi 0, %s29
      %s30 = sphi 0, %s27
      %s31 = sphi 0, %s30
      %s47 = sphi 0, %s31
      %s51 = sphi 0, %s51
      %s53 = sphi 0, %s51
      %s54 = sphi 0, %s53
      %s68 = sphi 0, %s54
      %s72 = sphi 0, %s72
      %s74 = sphi 0, %s72
      %s75 = sphi 0, %s74
      %s89 = sphi 0, %s75
      %s93 = sphi 0, %s93
      %s95 = sphi 0, %s93
      %s96 = sphi 0, %s95
      %s110 = sphi 0, %s96
      %s114 = sphi 0, %s114
      %s116 = sphi 0, %s114
      %s117 = sphi 0, %s116
      %s131 = sphi 0, %s117
      %s137 = sphi 0, %s139
      %s140 = sphi 0, %s137
      %s141 = sphi 0, %s140
      %s157 = sphi 0, %s141
    $region4: #{tpu_custom_call.1} parent=1 // loop_header_branch
      %20 = sbr.rel (%p18) target = $region8
    $region5: #{tpu_custom_call.1} parent=1 // loop_body
      %s22 = ssub.s32 %s17, 1
      %s23 = ssub.s32 %s17, 2
      %s24 = sadd.s32 %s17, 1
      %s25 = ssub.s32 %s17, %s24
      %p26 = scmp.eq.s32.totalorder %s25, 0
      %s28 = sadd.s32 %s27, 1
      %s29 = scalar_select %p26, %s27, %s28
      %p32 = pneg %p26
      %p33 = scmp.eq.s32.totalorder %s17, 1
      %p34 = por %p32, %p33
      %p35 = scmp.ne.s32.totalorder %s27, %s30
      %p36 = scmp.eq.s32.totalorder %s17, 0
      %p37 = por %p35, %p36
      %p38 = scmp.ne.s32.totalorder %s27, %s30
      %p39 = scmp.eq.s32.totalorder %s22, 1
      %p40 = por %p38, %p39
      %p41 = scmp.ne.s32.totalorder %s30, %s31
      %p42 = scmp.eq.s32.totalorder %s22, 0
      %p43 = por %p41, %p42
      %p44 = scmp.ne.s32.totalorder %s30, %s31
      %p45 = scmp.eq.s32.totalorder %s23, 1
      %p46 = por %p44, %p45
      %p48 = scmp.ne.s32.totalorder %s31, %s47
      %p49 = scmp.eq.s32.totalorder %s23, 0
      %p50 = por %p48, %p49
      %s52 = sadd.s32 %s51, 1
      %p55 = scmp.eq.s32.totalorder %s17, 1
      %p56 = scmp.ne.s32.totalorder %s51, %s53
      %p57 = scmp.eq.s32.totalorder %s17, 0
      %p58 = por %p56, %p57
      %p59 = scmp.ne.s32.totalorder %s51, %s53
      %p60 = scmp.eq.s32.totalorder %s22, 1
      %p61 = por %p59, %p60
      %p62 = scmp.ne.s32.totalorder %s53, %s54
      %p63 = scmp.eq.s32.totalorder %s22, 0
      %p64 = por %p62, %p63
      %p65 = scmp.ne.s32.totalorder %s53, %s54
      %p66 = scmp.eq.s32.totalorder %s23, 1
      %p67 = por %p65, %p66
      %p69 = scmp.ne.s32.totalorder %s54, %s68
      %p70 = scmp.eq.s32.totalorder %s23, 0
      %p71 = por %p69, %p70
      %s73 = sadd.s32 %s72, 1
      %p76 = scmp.eq.s32.totalorder %s17, 1
      %p77 = scmp.ne.s32.totalorder %s72, %s74
      %p78 = scmp.eq.s32.totalorder %s17, 0
      %p79 = por %p77, %p78
      %p80 = scmp.ne.s32.totalorder %s72, %s74
      %p81 = scmp.eq.s32.totalorder %s22, 1
      %p82 = por %p80, %p81
      %p83 = scmp.ne.s32.totalorder %s74, %s75
      %p84 = scmp.eq.s32.totalorder %s22, 0
      %p85 = por %p83, %p84
      %p86 = scmp.ne.s32.totalorder %s74, %s75
      %p87 = scmp.eq.s32.totalorder %s23, 1
      %p88 = por %p86, %p87
      %p90 = scmp.ne.s32.totalorder %s75, %s89
      %p91 = scmp.eq.s32.totalorder %s23, 0
      %p92 = por %p90, %p91
      %s94 = sadd.s32 %s93, 1
      %p97 = scmp.eq.s32.totalorder %s17, 1
      %p98 = scmp.ne.s32.totalorder %s93, %s95
      %p99 = scmp.eq.s32.totalorder %s17, 0
      %p100 = por %p98, %p99
      %p101 = scmp.ne.s32.totalorder %s93, %s95
      %p102 = scmp.eq.s32.totalorder %s22, 1
      %p103 = por %p101, %p102
      %p104 = scmp.ne.s32.totalorder %s95, %s96
      %p105 = scmp.eq.s32.totalorder %s22, 0
      %p106 = por %p104, %p105
      %p107 = scmp.ne.s32.totalorder %s95, %s96
      %p108 = scmp.eq.s32.totalorder %s23, 1
      %p109 = por %p107, %p108
      %p111 = scmp.ne.s32.totalorder %s96, %s110
      %p112 = scmp.eq.s32.totalorder %s23, 0
      %p113 = por %p111, %p112
      %s115 = sadd.s32 %s114, 1
      %p118 = scmp.eq.s32.totalorder %s17, 1
      %p119 = scmp.ne.s32.totalorder %s114, %s116
      %p120 = scmp.eq.s32.totalorder %s17, 0
      %p121 = por %p119, %p120
      %p122 = scmp.ne.s32.totalorder %s114, %s116
      %p123 = scmp.eq.s32.totalorder %s22, 1
      %p124 = por %p122, %p123
      %p125 = scmp.ne.s32.totalorder %s116, %s117
      %p126 = scmp.eq.s32.totalorder %s22, 0
      %p127 = por %p125, %p126
      %p128 = scmp.ne.s32.totalorder %s116, %s117
      %p129 = scmp.eq.s32.totalorder %s23, 1
      %p130 = por %p128, %p129
      %p132 = scmp.ne.s32.totalorder %s117, %s131
      %p133 = scmp.eq.s32.totalorder %s23, 0
      %p134 = por %p132, %p133
      %s135 = ssub.s32 %s17, %s24
      %p136 = scmp.eq.s32.totalorder %s135, 0
      %s138 = sadd.s32 %s137, 1
      %s139 = scalar_select %p136, %s137, %s138
      %p142 = pneg %p136
      %p143 = scmp.eq.s32.totalorder %s17, 1
      %p144 = por %p142, %p143
      %p145 = scmp.ne.s32.totalorder %s137, %s140
      %p146 = scmp.eq.s32.totalorder %s17, 0
      %p147 = por %p145, %p146
      %p148 = scmp.ne.s32.totalorder %s137, %s140
      %p149 = scmp.eq.s32.totalorder %s22, 1
      %p150 = por %p148, %p149
      %p151 = scmp.ne.s32.totalorder %s140, %s141
      %p152 = scmp.eq.s32.totalorder %s22, 0
      %p153 = por %p151, %p152
      %p154 = scmp.ne.s32.totalorder %s140, %s141
      %p155 = scmp.eq.s32.totalorder %s23, 1
      %p156 = por %p154, %p155
      %p158 = scmp.ne.s32.totalorder %s141, %s157
      %p159 = scmp.eq.s32.totalorder %s23, 0
      %p160 = por %p158, %p159
      %p161 = scmp.le.s32.totalorder 1, %s17
      %p162 = scmp.lt.s32.totalorder %s17, 3
      %p163 = pnand %p161, %p162
      %p164 = pneg %p163
      // Predicated region
      $region9: #{tpu_custom_call.1} parent=5 // pred_check
        _
      $region10: #{tpu_custom_call.1} parent=5 // pred_check_branch
        %166 = sbr.rel (%p163) target = $region12
      $region11: #{tpu_custom_call.1} parent=5 // pred_region
        %s167 = ssub.s32 %s17, 1
        // Predicated region
        $region13: #{tpu_custom_call.1} parent=11 // pred_check
          %p168 = pneg %p64
        $region14: #{tpu_custom_call.1} parent=11 // pred_check_branch
          %170 = sbr.rel (%p168) target = $region16
        $region15: #{tpu_custom_call.1} parent=11 // pred_region
          _
        $region16: #{tpu_custom_call.1} parent=11 // pred_fallthru
          _
        // Predicated region
        $region17: #{tpu_custom_call.1} parent=11 // pred_check
          %p171 = pneg %p85
        $region18: #{tpu_custom_call.1} parent=11 // pred_check_branch
          %173 = sbr.rel (%p171) target = $region20
        $region19: #{tpu_custom_call.1} parent=11 // pred_region
          _
        $region20: #{tpu_custom_call.1} parent=11 // pred_fallthru
          _
        // Predicated region
        $region21: #{tpu_custom_call.1} parent=11 // pred_check
          %p174 = pneg %p106
        $region22: #{tpu_custom_call.1} parent=11 // pred_check_branch
          %176 = sbr.rel (%p174) target = $region24
        $region23: #{tpu_custom_call.1} parent=11 // pred_region
          _
        $region24: #{tpu_custom_call.1} parent=11 // pred_fallthru
          _
        // Predicated region
        $region25: #{tpu_custom_call.1} parent=11 // pred_check
          %p177 = pneg %p127
        $region26: #{tpu_custom_call.1} parent=11 // pred_check_branch
          %179 = sbr.rel (%p177) target = $region28
        $region27: #{tpu_custom_call.1} parent=11 // pred_region
          _
        $region28: #{tpu_custom_call.1} parent=11 // pred_fallthru
          _
      $region12: #{tpu_custom_call.1} parent=5 // pred_fallthru
        _
      %p180 = scmp.lt.s32.totalorder %s17, 2
      // Predicated region
      $region29: #{tpu_custom_call.1} parent=5 // pred_check
        %p181 = pneg %p180
      $region30: #{tpu_custom_call.1} parent=5 // pred_check_branch
        %183 = sbr.rel (%p181) target = $region32
      $region31: #{tpu_custom_call.1} parent=5 // pred_region
        // Predicated region
        $region33: #{tpu_custom_call.1} parent=31 // pred_check
          %p184 = pneg %p37
        $region34: #{tpu_custom_call.1} parent=31 // pred_check_branch
          %186 = sbr.rel (%p184) target = $region36
        $region35: #{tpu_custom_call.1} parent=31 // pred_region
          %s187 = sand.u32 %s27, 1
          %s188 = scalar_lea.sflag [#allocation3], %s187
          %s189 = sand.u32 %s27, 1
          %s190 = smul.addr %s189, 256
          %s191 = scalar_lea.vmem [#allocation2], %s190
          %193 = vsyncadd %s188, 0
          %s194 = smul.addr %s17, 32
          %s195 = smul.addr %s194, 8
          %s196 = scalar_lea.hbm %s0, %s195
          %s197 = sshll.u32 %s196, 4
          %s198 = int_to_ptr.hbm [resolvable:$true] %s197
          %s199 = sshll.u32 %s191, 4
          %s200 = int_to_ptr.vmem [resolvable:$true] %s199
          %205 = dma.hbm_to_vmem [thread:$0]  %s198, 4096, %s200, %s188, 256, 256, 16
        $region36: #{tpu_custom_call.1} parent=31 // pred_fallthru
          _
      $region32: #{tpu_custom_call.1} parent=5 // pred_fallthru
        _
      %p206 = scmp.le.s32.totalorder 1, %s17
      %p207 = scmp.lt.s32.totalorder %s17, 3
      %p208 = pnand %p206, %p207
      %p209 = pneg %p208
      // Predicated region
      $region37: #{tpu_custom_call.1} parent=5 // pred_check
        _
      $region38: #{tpu_custom_call.1} parent=5 // pred_check_branch
        %211 = sbr.rel (%p208) target = $region40
      $region39: #{tpu_custom_call.1} parent=5 // pred_region
        %s212 = ssub.s32 %s17, 1
        %s213 = sand.u32 %s30, 1
        %s214 = scalar_lea.sflag [#allocation3], %s213
        %s215 = sand.u32 %s30, 1
        %s216 = smul.addr %s215, 256
        %s217 = scalar_lea.vmem [#allocation2], %s216
        // Predicated region
        $region41: #{tpu_custom_call.1} parent=39 // pred_check
          %p218 = pneg %p43
        $region42: #{tpu_custom_call.1} parent=39 // pred_check_branch
          %220 = sbr.rel (%p218) target = $region44
        $region43: #{tpu_custom_call.1} parent=39 // pred_region
          %222 = dma.done %s214, 4096
        $region44: #{tpu_custom_call.1} parent=39 // pred_fallthru
          _
        %s223 = sand.u32 %s30, 1
        %s224 = scalar_lea.sflag [#allocation3], %s223
        %s225 = sand.u32 %s30, 1
        %s226 = smul.addr %s225, 256
        %s227 = scalar_lea.vmem [#allocation2], %s226
        %p228 = pneg %p43
        %p229 = pneg %p40
        %p230 = pneg %p64
        %p231 = pneg %p61
        %p232 = pneg %p85
        %p233 = pneg %p82
        %p234 = pneg %p106
        %p235 = pneg %p103
        %p236 = pneg %p127
        %p237 = pneg %p124
        %p238 = pneg %p153
        %p239 = pneg %p150
        %s240 = sand.u32 %s140, 1
        %s241 = scalar_lea.sflag [#allocation4], %s240
        %s242 = sand.u32 %s140, 1
        %s243 = smul.addr %s242, 256
        %s244 = scalar_lea.vmem [#allocation5], %s243
        %v245 = vld [vmem:[%s217] sm:$0xff]
        %v246 = vld [vmem:[%s217 + $0x8] sm:$0xff]
        %v247 = vld [vmem:[%s217 + $0x10] sm:$0xff]
        %v248 = vld [vmem:[%s217 + $0x18] sm:$0xff]
        %v249 = vld [vmem:[%s217 + $0x20] sm:$0xff]
        %v250 = vld [vmem:[%s217 + $0x28] sm:$0xff]
        %v251 = vld [vmem:[%s217 + $0x30] sm:$0xff]
        %v252 = vld [vmem:[%s217 + $0x38] sm:$0xff]
        %v253 = vld [vmem:[%s217 + $0x40] sm:$0xff]
        %v254 = vld [vmem:[%s217 + $0x48] sm:$0xff]
        %v255 = vld [vmem:[%s217 + $0x50] sm:$0xff]
        %v256 = vld [vmem:[%s217 + $0x58] sm:$0xff]
        %v257 = vld [vmem:[%s217 + $0x60] sm:$0xff]
        %v258 = vld [vmem:[%s217 + $0x68] sm:$0xff]
        %v259 = vld [vmem:[%s217 + $0x70] sm:$0xff]
        %v260 = vld [vmem:[%s217 + $0x78] sm:$0xff]
        %v261 = vld [vmem:[%s217 + $0x80] sm:$0xff]
        %v262 = vld [vmem:[%s217 + $0x88] sm:$0xff]
        %v263 = vld [vmem:[%s217 + $0x90] sm:$0xff]
        %v264 = vld [vmem:[%s217 + $0x98] sm:$0xff]
        %v265 = vld [vmem:[%s217 + $0xa0] sm:$0xff]
        %v266 = vld [vmem:[%s217 + $0xa8] sm:$0xff]
        %v267 = vld [vmem:[%s217 + $0xb0] sm:$0xff]
        %v268 = vld [vmem:[%s217 + $0xb8] sm:$0xff]
        %v269 = vld [vmem:[%s217 + $0xc0] sm:$0xff]
        %v270 = vld [vmem:[%s217 + $0xc8] sm:$0xff]
        %v271 = vld [vmem:[%s217 + $0xd0] sm:$0xff]
        %v272 = vld [vmem:[%s217 + $0xd8] sm:$0xff]
        %v273 = vld [vmem:[%s217 + $0xe0] sm:$0xff]
        %v274 = vld [vmem:[%s217 + $0xe8] sm:$0xff]
        %v275 = vld [vmem:[%s217 + $0xf0] sm:$0xff]
        %v276 = vld [vmem:[%s217 + $0xf8] sm:$0xff]
        %v277 = vadd.f32 %v245, %v246
        %278 = vadd.xlane.f32.xlu0 %v277
        %v279 = vpop.xlane.xlu0 %278
        %v280 = vadd.f32 %v247, %v248
        %281 = vadd.xlane.f32.xlu0 %v280
        %v282 = vpop.xlane.xlu0 %281
        %v283 = vadd.f32 %v249, %v250
        %284 = vadd.xlane.f32.xlu0 %v283
        %v285 = vpop.xlane.xlu0 %284
        %v286 = vadd.f32 %v251, %v252
        %287 = vadd.xlane.f32.xlu0 %v286
        %v288 = vpop.xlane.xlu0 %287
        %v289 = vadd.f32 %v253, %v254
        %290 = vadd.xlane.f32.xlu0 %v289
        %v291 = vpop.xlane.xlu0 %290
        %v292 = vadd.f32 %v255, %v256
        %293 = vadd.xlane.f32.xlu0 %v292
        %v294 = vpop.xlane.xlu0 %293
        %v295 = vadd.f32 %v257, %v258
        %296 = vadd.xlane.f32.xlu0 %v295
        %v297 = vpop.xlane.xlu0 %296
        %v298 = vadd.f32 %v259, %v260
        %299 = vadd.xlane.f32.xlu0 %v298
        %v300 = vpop.xlane.xlu0 %299
        %v301 = vadd.f32 %v261, %v262
        %302 = vadd.xlane.f32.xlu0 %v301
        %v303 = vpop.xlane.xlu0 %302
        %v304 = vadd.f32 %v263, %v264
        %305 = vadd.xlane.f32.xlu0 %v304
        %v306 = vpop.xlane.xlu0 %305
        %v307 = vadd.f32 %v265, %v266
        %308 = vadd.xlane.f32.xlu0 %v307
        %v309 = vpop.xlane.xlu0 %308
        %v310 = vadd.f32 %v267, %v268
        %311 = vadd.xlane.f32.xlu0 %v310
        %v312 = vpop.xlane.xlu0 %311
        %v313 = vadd.f32 %v269, %v270
        %314 = vadd.xlane.f32.xlu0 %v313
        %v315 = vpop.xlane.xlu0 %314
        %v316 = vadd.f32 %v271, %v272
        %317 = vadd.xlane.f32.xlu0 %v316
        %v318 = vpop.xlane.xlu0 %317
        %v319 = vadd.f32 %v273, %v274
        %320 = vadd.xlane.f32.xlu0 %v319
        %v321 = vpop.xlane.xlu0 %320
        %v322 = vadd.f32 %v275, %v276
        %323 = vadd.xlane.f32.xlu0 %v322
        %v324 = vpop.xlane.xlu0 %323
        %v325 = vrcp.pop 256.0
        %v326 = vmul.f32 256.0, %v325
        %v327 = vsub.f32 1.0, %v326
        %v328 = vmul.f32 %v325, %v327
        %v329 = vadd.f32 %v325, %v328
        %vm330 = vweird.f32 %v325
        %v331 = vsel %vm330, %v325, %v329
        %v332 = vmul.f32 %v279, %v331
        %v333 = vmul.f32 %v282, %v331
        %v334 = vmul.f32 %v285, %v331
        %v335 = vmul.f32 %v288, %v331
        %v336 = vmul.f32 %v291, %v331
        %v337 = vmul.f32 %v294, %v331
        %v338 = vmul.f32 %v297, %v331
        %v339 = vmul.f32 %v300, %v331
        %v340 = vmul.f32 %v303, %v331
        %v341 = vmul.f32 %v306, %v331
        %v342 = vmul.f32 %v309, %v331
        %v343 = vmul.f32 %v312, %v331
        %v344 = vmul.f32 %v315, %v331
        %v345 = vmul.f32 %v318, %v331
        %v346 = vmul.f32 %v321, %v331
        %v347 = vmul.f32 %v324, %v331
        %v348 = vld [vmem:[%s1] sm:$0xff]
        %v349 = vld [vmem:[%s2] sm:$0xff]
        %350 = vmatpush.msra.mxu0 %v347
        %351 = vmatpush.msra.mxu0 %v346
        %352 = vmatpush.msra.mxu0 %v345
        %353 = vmatpush.msra.mxu0 %v344
        %354 = vmatpush.msra.mxu0 %v343
        %355 = vmatpush.msra.mxu0 %v342
        %356 = vmatpush.msra.mxu0 %v341
        %357 = vmatpush.msra.mxu0 %v340
        %358 = vmatpush.msra.mxu0 %v339
        %359 = vmatpush.msra.mxu0 %v338
        %360 = vmatpush.msra.mxu0 %v337
        %361 = vmatpush.msra.mxu0 %v336
        %362 = vmatpush.msra.mxu0 %v335
        %363 = vmatpush.msra.mxu0 %v334
        %364 = vmatpush.msra.mxu0 %v333
        %365 = vmatpush.msra.mxu0 %v332
        %366 = vmatmul.f32.gmra.mxu0 %v348
        %v367 = vpop.f32.mrf.mxu0
        %v368 = vadd.f32 %v349, %v367
        %369 = vdwg.mxu0
        %v370 = vmax.f32 %v368, 0.0
        %v371 = vld [vmem:[%s3] sm:$0xff]
        %v372 = vld [vmem:[%s3 + $0x8] sm:$0xff]
        %v373 = vld [vmem:[%s3 + $0x10] sm:$0xff]
        %v374 = vld [vmem:[%s3 + $0x18] sm:$0xff]
        %v375 = vld [vmem:[%s3 + $0x20] sm:$0xff]
        %v376 = vld [vmem:[%s3 + $0x28] sm:$0xff]
        %v377 = vld [vmem:[%s3 + $0x30] sm:$0xff]
        %v378 = vld [vmem:[%s3 + $0x38] sm:$0xff]
        %v379 = vld [vmem:[%s3 + $0x40] sm:$0xff]
        %v380 = vld [vmem:[%s3 + $0x48] sm:$0xff]
        %v381 = vld [vmem:[%s3 + $0x50] sm:$0xff]
        %v382 = vld [vmem:[%s3 + $0x58] sm:$0xff]
        %v383 = vld [vmem:[%s3 + $0x60] sm:$0xff]
        %v384 = vld [vmem:[%s3 + $0x68] sm:$0xff]
        %v385 = vld [vmem:[%s3 + $0x70] sm:$0xff]
        %v386 = vld [vmem:[%s3 + $0x78] sm:$0xff]
        %v387 = vld [vmem:[%s4] sm:$0xff]
        %v388 = vld [vmem:[%s4 + $0x8] sm:$0xff]
        %v389 = vld [vmem:[%s4 + $0x10] sm:$0xff]
        %v390 = vld [vmem:[%s4 + $0x18] sm:$0xff]
        %v391 = vld [vmem:[%s4 + $0x20] sm:$0xff]
        %v392 = vld [vmem:[%s4 + $0x28] sm:$0xff]
        %v393 = vld [vmem:[%s4 + $0x30] sm:$0xff]
        %v394 = vld [vmem:[%s4 + $0x38] sm:$0xff]
        %v395 = vld [vmem:[%s4 + $0x40] sm:$0xff]
        %v396 = vld [vmem:[%s4 + $0x48] sm:$0xff]
        %v397 = vld [vmem:[%s4 + $0x50] sm:$0xff]
        %v398 = vld [vmem:[%s4 + $0x58] sm:$0xff]
        %v399 = vld [vmem:[%s4 + $0x60] sm:$0xff]
        %v400 = vld [vmem:[%s4 + $0x68] sm:$0xff]
        %v401 = vld [vmem:[%s4 + $0x70] sm:$0xff]
        %v402 = vld [vmem:[%s4 + $0x78] sm:$0xff]
        %vm403 = vcmask 64512
        %v405 = vsel %vm403, %v371, 0
        %v408 = vsel %vm403, %v372, 0
        %v411 = vsel %vm403, %v373, 0
        %v414 = vsel %vm403, %v374, 0
        %v417 = vsel %vm403, %v375, 0
        %v420 = vsel %vm403, %v376, 0
        %v423 = vsel %vm403, %v377, 0
        %v426 = vsel %vm403, %v378, 0
        %v429 = vsel %vm403, %v379, 0
        %v432 = vsel %vm403, %v380, 0
        %v435 = vsel %vm403, %v381, 0
        %v438 = vsel %vm403, %v382, 0
        %v441 = vsel %vm403, %v383, 0
        %v444 = vsel %vm403, %v384, 0
        %v447 = vsel %vm403, %v385, 0
        %v450 = vsel %vm403, %v386, 0
        %452 = vmatpush.msra.mxu0 0.0
        %453 = vmatpush.msra.mxu0 0.0
        %454 = vmatpush.msra.mxu0 0.0
        %455 = vmatpush.msra.mxu0 0.0
        %456 = vmatpush.msra.mxu0 0.0
        %457 = vmatpush.msra.mxu0 0.0
        %458 = vmatpush.msra.mxu0 0.0
        %459 = vmatpush.msra.mxu0 0.0
        %460 = vmatpush.msra.mxu0 0.0
        %461 = vmatpush.msra.mxu0 0.0
        %462 = vmatpush.msra.mxu0 0.0
        %463 = vmatpush.msra.mxu0 0.0
        %464 = vmatpush.msra.mxu0 0.0
        %465 = vmatpush.msra.mxu0 0.0
        %466 = vmatpush.msra.mxu0 0.0
        %467 = vmatpush.msra.mxu0 %v370
        %468 = vmatmul.f32.gmra.mxu0 %v405
        %v469 = vpop.f32.mrf.mxu0
        %v470 = vadd.f32 %v387, %v469
        %471 = vmatmul.f32.gmra.mxu0 %v408
        %v472 = vpop.f32.mrf.mxu0
        %v473 = vadd.f32 %v388, %v472
        %474 = vmatmul.f32.gmra.mxu0 %v411
        %v475 = vpop.f32.mrf.mxu0
        %v476 = vadd.f32 %v389, %v475
        %477 = vmatmul.f32.gmra.mxu0 %v414
        %v478 = vpop.f32.mrf.mxu0
        %v479 = vadd.f32 %v390, %v478
        %480 = vmatmul.f32.gmra.mxu0 %v417
        %v481 = vpop.f32.mrf.mxu0
        %v482 = vadd.f32 %v391, %v481
        %483 = vmatmul.f32.gmra.mxu0 %v420
        %v484 = vpop.f32.mrf.mxu0
        %v485 = vadd.f32 %v392, %v484
        %486 = vmatmul.f32.gmra.mxu0 %v423
        %v487 = vpop.f32.mrf.mxu0
        %v488 = vadd.f32 %v393, %v487
        %489 = vmatmul.f32.gmra.mxu0 %v426
        %v490 = vpop.f32.mrf.mxu0
        %v491 = vadd.f32 %v394, %v490
        %492 = vmatmul.f32.gmra.mxu0 %v429
        %v493 = vpop.f32.mrf.mxu0
        %v494 = vadd.f32 %v395, %v493
        %495 = vmatmul.f32.gmra.mxu0 %v432
        %v496 = vpop.f32.mrf.mxu0
        %v497 = vadd.f32 %v396, %v496
        %498 = vmatmul.f32.gmra.mxu0 %v435
        %v499 = vpop.f32.mrf.mxu0
        %v500 = vadd.f32 %v397, %v499
        %501 = vmatmul.f32.gmra.mxu0 %v438
        %v502 = vpop.f32.mrf.mxu0
        %v503 = vadd.f32 %v398, %v502
        %504 = vmatmul.f32.gmra.mxu0 %v441
        %v505 = vpop.f32.mrf.mxu0
        %v506 = vadd.f32 %v399, %v505
        %507 = vmatmul.f32.gmra.mxu0 %v444
        %v508 = vpop.f32.mrf.mxu0
        %v509 = vadd.f32 %v400, %v508
        %510 = vmatmul.f32.gmra.mxu0 %v447
        %v511 = vpop.f32.mrf.mxu0
        %v512 = vadd.f32 %v401, %v511
        %513 = vmatmul.f32.gmra.mxu0 %v450
        %v514 = vpop.f32.mrf.mxu0
        %v515 = vadd.f32 %v402, %v514
        %516 = vdwg.mxu0
        %v517 = vxor.u32 %v470, 2147483648
        %v518 = vxor.u32 %v473, 2147483648
        %v519 = vxor.u32 %v476, 2147483648
        %v520 = vxor.u32 %v479, 2147483648
        %v521 = vxor.u32 %v482, 2147483648
        %v522 = vxor.u32 %v485, 2147483648
        %v523 = vxor.u32 %v488, 2147483648
        %v524 = vxor.u32 %v491, 2147483648
        %v525 = vxor.u32 %v494, 2147483648
        %v526 = vxor.u32 %v497, 2147483648
        %v527 = vxor.u32 %v500, 2147483648
        %v528 = vxor.u32 %v503, 2147483648
        %v529 = vxor.u32 %v506, 2147483648
        %v530 = vxor.u32 %v509, 2147483648
        %v531 = vxor.u32 %v512, 2147483648
        %v532 = vxor.u32 %v515, 2147483648
        %v533 = vmul.f32 %v517, 1.442695
        %v534 = vpow.pop %v533
        %v535 = vmul.f32 %v518, 1.442695
        %v536 = vpow.pop %v535
        %v537 = vmul.f32 %v519, 1.442695
        %v538 = vpow.pop %v537
        %v539 = vmul.f32 %v520, 1.442695
        %v540 = vpow.pop %v539
        %v541 = vmul.f32 %v521, 1.442695
        %v542 = vpow.pop %v541
        %v543 = vmul.f32 %v522, 1.442695
        %v544 = vpow.pop %v543
        %v545 = vmul.f32 %v523, 1.442695
        %v546 = vpow.pop %v545
        %v547 = vmul.f32 %v524, 1.442695
        %v548 = vpow.pop %v547
        %v549 = vmul.f32 %v525, 1.442695
        %v550 = vpow.pop %v549
        %v551 = vmul.f32 %v526, 1.442695
        %v552 = vpow.pop %v551
        %v553 = vmul.f32 %v527, 1.442695
        %v554 = vpow.pop %v553
        %v555 = vmul.f32 %v528, 1.442695
        %v556 = vpow.pop %v555
        %v557 = vmul.f32 %v529, 1.442695
        %v558 = vpow.pop %v557
        %v559 = vmul.f32 %v530, 1.442695
        %v560 = vpow.pop %v559
        %v561 = vmul.f32 %v531, 1.442695
        %v562 = vpow.pop %v561
        %v563 = vmul.f32 %v532, 1.442695
        %v564 = vpow.pop %v563
        %v565 = vadd.f32 %v534, 1.0
        %v566 = vadd.f32 %v536, 1.0
        %v567 = vadd.f32 %v538, 1.0
        %v568 = vadd.f32 %v540, 1.0
        %v569 = vadd.f32 %v542, 1.0
        %v570 = vadd.f32 %v544, 1.0
        %v571 = vadd.f32 %v546, 1.0
        %v572 = vadd.f32 %v548, 1.0
        %v573 = vadd.f32 %v550, 1.0
        %v574 = vadd.f32 %v552, 1.0
        %v575 = vadd.f32 %v554, 1.0
        %v576 = vadd.f32 %v556, 1.0
        %v577 = vadd.f32 %v558, 1.0
        %v578 = vadd.f32 %v560, 1.0
        %v579 = vadd.f32 %v562, 1.0
        %v580 = vadd.f32 %v564, 1.0
        %v581 = vrcp.pop %v565
        %v582 = vmul.f32 %v565, %v581
        %v583 = vsub.f32 1.0, %v582
        %v584 = vmul.f32 %v581, %v583
        %v585 = vadd.f32 %v581, %v584
        %vm586 = vweird.f32 %v565
        %vm587 = vweird.f32 %v581
        %vm588 = vmor %vm586, %vm587
        %v589 = vsel %vm588, %v581, %v585
        %v590 = vand.u32 2147483647, %v565
        %vm591 = vcmp.eq.f32.partialorder %v590, 8.507059e+37
        %v592 = vand.u32 %v565, 2147483648
        %v593 = vor.u32 1.1754944e-38, %v592
        %v594 = vsel %vm591, %v593, %v589
        %v595 = vmul.f32 1.0, %v594
        %v596 = vrcp.pop %v566
        %v597 = vmul.f32 %v566, %v596
        %v598 = vsub.f32 1.0, %v597
        %v599 = vmul.f32 %v596, %v598
        %v600 = vadd.f32 %v596, %v599
        %vm601 = vweird.f32 %v566
        %vm602 = vweird.f32 %v596
        %vm603 = vmor %vm601, %vm602
        %v604 = vsel %vm603, %v596, %v600
        %v605 = vand.u32 2147483647, %v566
        %vm606 = vcmp.eq.f32.partialorder %v605, 8.507059e+37
        %v607 = vand.u32 %v566, 2147483648
        %v608 = vor.u32 1.1754944e-38, %v607
        %v609 = vsel %vm606, %v608, %v604
        %v610 = vmul.f32 1.0, %v609
        %v611 = vrcp.pop %v567
        %v612 = vmul.f32 %v567, %v611
        %v613 = vsub.f32 1.0, %v612
        %v614 = vmul.f32 %v611, %v613
        %v615 = vadd.f32 %v611, %v614
        %vm616 = vweird.f32 %v567
        %vm617 = vweird.f32 %v611
        %vm618 = vmor %vm616, %vm617
        %v619 = vsel %vm618, %v611, %v615
        %v620 = vand.u32 2147483647, %v567
        %vm621 = vcmp.eq.f32.partialorder %v620, 8.507059e+37
        %v622 = vand.u32 %v567, 2147483648
        %v623 = vor.u32 1.1754944e-38, %v622
        %v624 = vsel %vm621, %v623, %v619
        %v625 = vmul.f32 1.0, %v624
        %v626 = vrcp.pop %v568
        %v627 = vmul.f32 %v568, %v626
        %v628 = vsub.f32 1.0, %v627
        %v629 = vmul.f32 %v626, %v628
        %v630 = vadd.f32 %v626, %v629
        %vm631 = vweird.f32 %v568
        %vm632 = vweird.f32 %v626
        %vm633 = vmor %vm631, %vm632
        %v634 = vsel %vm633, %v626, %v630
        %v635 = vand.u32 2147483647, %v568
        %vm636 = vcmp.eq.f32.partialorder %v635, 8.507059e+37
        %v637 = vand.u32 %v568, 2147483648
        %v638 = vor.u32 1.1754944e-38, %v637
        %v639 = vsel %vm636, %v638, %v634
        %v640 = vmul.f32 1.0, %v639
        %v641 = vrcp.pop %v569
        %v642 = vmul.f32 %v569, %v641
        %v643 = vsub.f32 1.0, %v642
        %v644 = vmul.f32 %v641, %v643
        %v645 = vadd.f32 %v641, %v644
        %vm646 = vweird.f32 %v569
        %vm647 = vweird.f32 %v641
        %vm648 = vmor %vm646, %vm647
        %v649 = vsel %vm648, %v641, %v645
        %v650 = vand.u32 2147483647, %v569
        %vm651 = vcmp.eq.f32.partialorder %v650, 8.507059e+37
        %v652 = vand.u32 %v569, 2147483648
        %v653 = vor.u32 1.1754944e-38, %v652
        %v654 = vsel %vm651, %v653, %v649
        %v655 = vmul.f32 1.0, %v654
        %v656 = vrcp.pop %v570
        %v657 = vmul.f32 %v570, %v656
        %v658 = vsub.f32 1.0, %v657
        %v659 = vmul.f32 %v656, %v658
        %v660 = vadd.f32 %v656, %v659
        %vm661 = vweird.f32 %v570
        %vm662 = vweird.f32 %v656
        %vm663 = vmor %vm661, %vm662
        %v664 = vsel %vm663, %v656, %v660
        %v665 = vand.u32 2147483647, %v570
        %vm666 = vcmp.eq.f32.partialorder %v665, 8.507059e+37
        %v667 = vand.u32 %v570, 2147483648
        %v668 = vor.u32 1.1754944e-38, %v667
        %v669 = vsel %vm666, %v668, %v664
        %v670 = vmul.f32 1.0, %v669
        %v671 = vrcp.pop %v571
        %v672 = vmul.f32 %v571, %v671
        %v673 = vsub.f32 1.0, %v672
        %v674 = vmul.f32 %v671, %v673
        %v675 = vadd.f32 %v671, %v674
        %vm676 = vweird.f32 %v571
        %vm677 = vweird.f32 %v671
        %vm678 = vmor %vm676, %vm677
        %v679 = vsel %vm678, %v671, %v675
        %v680 = vand.u32 2147483647, %v571
        %vm681 = vcmp.eq.f32.partialorder %v680, 8.507059e+37
        %v682 = vand.u32 %v571, 2147483648
        %v683 = vor.u32 1.1754944e-38, %v682
        %v684 = vsel %vm681, %v683, %v679
        %v685 = vmul.f32 1.0, %v684
        %v686 = vrcp.pop %v572
        %v687 = vmul.f32 %v572, %v686
        %v688 = vsub.f32 1.0, %v687
        %v689 = vmul.f32 %v686, %v688
        %v690 = vadd.f32 %v686, %v689
        %vm691 = vweird.f32 %v572
        %vm692 = vweird.f32 %v686
        %vm693 = vmor %vm691, %vm692
        %v694 = vsel %vm693, %v686, %v690
        %v695 = vand.u32 2147483647, %v572
        %vm696 = vcmp.eq.f32.partialorder %v695, 8.507059e+37
        %v697 = vand.u32 %v572, 2147483648
        %v698 = vor.u32 1.1754944e-38, %v697
        %v699 = vsel %vm696, %v698, %v694
        %v700 = vmul.f32 1.0, %v699
        %v701 = vrcp.pop %v573
        %v702 = vmul.f32 %v573, %v701
        %v703 = vsub.f32 1.0, %v702
        %v704 = vmul.f32 %v701, %v703
        %v705 = vadd.f32 %v701, %v704
        %vm706 = vweird.f32 %v573
        %vm707 = vweird.f32 %v701
        %vm708 = vmor %vm706, %vm707
        %v709 = vsel %vm708, %v701, %v705
        %v710 = vand.u32 2147483647, %v573
        %vm711 = vcmp.eq.f32.partialorder %v710, 8.507059e+37
        %v712 = vand.u32 %v573, 2147483648
        %v713 = vor.u32 1.1754944e-38, %v712
        %v714 = vsel %vm711, %v713, %v709
        %v715 = vmul.f32 1.0, %v714
        %v716 = vrcp.pop %v574
        %v717 = vmul.f32 %v574, %v716
        %v718 = vsub.f32 1.0, %v717
        %v719 = vmul.f32 %v716, %v718
        %v720 = vadd.f32 %v716, %v719
        %vm721 = vweird.f32 %v574
        %vm722 = vweird.f32 %v716
        %vm723 = vmor %vm721, %vm722
        %v724 = vsel %vm723, %v716, %v720
        %v725 = vand.u32 2147483647, %v574
        %vm726 = vcmp.eq.f32.partialorder %v725, 8.507059e+37
        %v727 = vand.u32 %v574, 2147483648
        %v728 = vor.u32 1.1754944e-38, %v727
        %v729 = vsel %vm726, %v728, %v724
        %v730 = vmul.f32 1.0, %v729
        %v731 = vrcp.pop %v575
        %v732 = vmul.f32 %v575, %v731
        %v733 = vsub.f32 1.0, %v732
        %v734 = vmul.f32 %v731, %v733
        %v735 = vadd.f32 %v731, %v734
        %vm736 = vweird.f32 %v575
        %vm737 = vweird.f32 %v731
        %vm738 = vmor %vm736, %vm737
        %v739 = vsel %vm738, %v731, %v735
        %v740 = vand.u32 2147483647, %v575
        %vm741 = vcmp.eq.f32.partialorder %v740, 8.507059e+37
        %v742 = vand.u32 %v575, 2147483648
        %v743 = vor.u32 1.1754944e-38, %v742
        %v744 = vsel %vm741, %v743, %v739
        %v745 = vmul.f32 1.0, %v744
        %v746 = vrcp.pop %v576
        %v747 = vmul.f32 %v576, %v746
        %v748 = vsub.f32 1.0, %v747
        %v749 = vmul.f32 %v746, %v748
        %v750 = vadd.f32 %v746, %v749
        %vm751 = vweird.f32 %v576
        %vm752 = vweird.f32 %v746
        %vm753 = vmor %vm751, %vm752
        %v754 = vsel %vm753, %v746, %v750
        %v755 = vand.u32 2147483647, %v576
        %vm756 = vcmp.eq.f32.partialorder %v755, 8.507059e+37
        %v757 = vand.u32 %v576, 2147483648
        %v758 = vor.u32 1.1754944e-38, %v757
        %v759 = vsel %vm756, %v758, %v754
        %v760 = vmul.f32 1.0, %v759
        %v761 = vrcp.pop %v577
        %v762 = vmul.f32 %v577, %v761
        %v763 = vsub.f32 1.0, %v762
        %v764 = vmul.f32 %v761, %v763
        %v765 = vadd.f32 %v761, %v764
        %vm766 = vweird.f32 %v577
        %vm767 = vweird.f32 %v761
        %vm768 = vmor %vm766, %vm767
        %v769 = vsel %vm768, %v761, %v765
        %v770 = vand.u32 2147483647, %v577
        %vm771 = vcmp.eq.f32.partialorder %v770, 8.507059e+37
        %v772 = vand.u32 %v577, 2147483648
        %v773 = vor.u32 1.1754944e-38, %v772
        %v774 = vsel %vm771, %v773, %v769
        %v775 = vmul.f32 1.0, %v774
        %v776 = vrcp.pop %v578
        %v777 = vmul.f32 %v578, %v776
        %v778 = vsub.f32 1.0, %v777
        %v779 = vmul.f32 %v776, %v778
        %v780 = vadd.f32 %v776, %v779
        %vm781 = vweird.f32 %v578
        %vm782 = vweird.f32 %v776
        %vm783 = vmor %vm781, %vm782
        %v784 = vsel %vm783, %v776, %v780
        %v785 = vand.u32 2147483647, %v578
        %vm786 = vcmp.eq.f32.partialorder %v785, 8.507059e+37
        %v787 = vand.u32 %v578, 2147483648
        %v788 = vor.u32 1.1754944e-38, %v787
        %v789 = vsel %vm786, %v788, %v784
        %v790 = vmul.f32 1.0, %v789
        %v791 = vrcp.pop %v579
        %v792 = vmul.f32 %v579, %v791
        %v793 = vsub.f32 1.0, %v792
        %v794 = vmul.f32 %v791, %v793
        %v795 = vadd.f32 %v791, %v794
        %vm796 = vweird.f32 %v579
        %vm797 = vweird.f32 %v791
        %vm798 = vmor %vm796, %vm797
        %v799 = vsel %vm798, %v791, %v795
        %v800 = vand.u32 2147483647, %v579
        %vm801 = vcmp.eq.f32.partialorder %v800, 8.507059e+37
        %v802 = vand.u32 %v579, 2147483648
        %v803 = vor.u32 1.1754944e-38, %v802
        %v804 = vsel %vm801, %v803, %v799
        %v805 = vmul.f32 1.0, %v804
        %v806 = vrcp.pop %v580
        %v807 = vmul.f32 %v580, %v806
        %v808 = vsub.f32 1.0, %v807
        %v809 = vmul.f32 %v806, %v808
        %v810 = vadd.f32 %v806, %v809
        %vm811 = vweird.f32 %v580
        %vm812 = vweird.f32 %v806
        %vm813 = vmor %vm811, %vm812
        %v814 = vsel %vm813, %v806, %v810
        %v815 = vand.u32 2147483647, %v580
        %vm816 = vcmp.eq.f32.partialorder %v815, 8.507059e+37
        %v817 = vand.u32 %v580, 2147483648
        %v818 = vor.u32 1.1754944e-38, %v817
        %v819 = vsel %vm816, %v818, %v814
        %v820 = vmul.f32 1.0, %v819
        %822 = vset.pattern.permute.xlu0 0
        %823 = vperm.xlu0 %822, %v595
        %v824 = vpop.permute.xlu0 %823
        %827 = vset.pattern.permute.xlu0 0
        %828 = vperm.xlu0 %827, %v610
        %v829 = vpop.permute.xlu0 %828
        %832 = vset.pattern.permute.xlu0 0
        %833 = vperm.xlu0 %832, %v625
        %v834 = vpop.permute.xlu0 %833
        %837 = vset.pattern.permute.xlu0 0
        %838 = vperm.xlu0 %837, %v640
        %v839 = vpop.permute.xlu0 %838
        %842 = vset.pattern.permute.xlu0 0
        %843 = vperm.xlu0 %842, %v655
        %v844 = vpop.permute.xlu0 %843
        %847 = vset.pattern.permute.xlu0 0
        %848 = vperm.xlu0 %847, %v670
        %v849 = vpop.permute.xlu0 %848
        %852 = vset.pattern.permute.xlu0 0
        %853 = vperm.xlu0 %852, %v685
        %v854 = vpop.permute.xlu0 %853
        %857 = vset.pattern.permute.xlu0 0
        %858 = vperm.xlu0 %857, %v700
        %v859 = vpop.permute.xlu0 %858
        %862 = vset.pattern.permute.xlu0 0
        %863 = vperm.xlu0 %862, %v715
        %v864 = vpop.permute.xlu0 %863
        %867 = vset.pattern.permute.xlu0 0
        %868 = vperm.xlu0 %867, %v730
        %v869 = vpop.permute.xlu0 %868
        %872 = vset.pattern.permute.xlu0 0
        %873 = vperm.xlu0 %872, %v745
        %v874 = vpop.permute.xlu0 %873
        %877 = vset.pattern.permute.xlu0 0
        %878 = vperm.xlu0 %877, %v760
        %v879 = vpop.permute.xlu0 %878
        %882 = vset.pattern.permute.xlu0 0
        %883 = vperm.xlu0 %882, %v775
        %v884 = vpop.permute.xlu0 %883
        %887 = vset.pattern.permute.xlu0 0
        %888 = vperm.xlu0 %887, %v790
        %v889 = vpop.permute.xlu0 %888
        %892 = vset.pattern.permute.xlu0 0
        %893 = vperm.xlu0 %892, %v805
        %v894 = vpop.permute.xlu0 %893
        %897 = vset.pattern.permute.xlu0 0
        %898 = vperm.xlu0 %897, %v820
        %v899 = vpop.permute.xlu0 %898
        %v901 = vmul.f32 %v245, %v824
        %v902 = vmul.f32 %v246, %v824
        %v903 = vmul.f32 %v247, %v829
        %v904 = vmul.f32 %v248, %v829
        %v905 = vmul.f32 %v249, %v834
        %v906 = vmul.f32 %v250, %v834
        %v907 = vmul.f32 %v251, %v839
        %v908 = vmul.f32 %v252, %v839
        %v909 = vmul.f32 %v253, %v844
        %v910 = vmul.f32 %v254, %v844
        %v911 = vmul.f32 %v255, %v849
        %v912 = vmul.f32 %v256, %v849
        %v913 = vmul.f32 %v257, %v854
        %v914 = vmul.f32 %v258, %v854
        %v915 = vmul.f32 %v259, %v859
        %v916 = vmul.f32 %v260, %v859
        %v917 = vmul.f32 %v261, %v864
        %v918 = vmul.f32 %v262, %v864
        %v919 = vmul.f32 %v263, %v869
        %v920 = vmul.f32 %v264, %v869
        %v921 = vmul.f32 %v265, %v874
        %v922 = vmul.f32 %v266, %v874
        %v923 = vmul.f32 %v267, %v879
        %v924 = vmul.f32 %v268, %v879
        %v925 = vmul.f32 %v269, %v884
        %v926 = vmul.f32 %v270, %v884
        %v927 = vmul.f32 %v271, %v889
        %v928 = vmul.f32 %v272, %v889
        %v929 = vmul.f32 %v273, %v894
        %v930 = vmul.f32 %v274, %v894
        %v931 = vmul.f32 %v275, %v899
        %v932 = vmul.f32 %v276, %v899
        %933 = vst [vmem:[%s244] sm:$0xff] %v901
        %934 = vst [vmem:[%s244 + $0x8] sm:$0xff] %v902
        %935 = vst [vmem:[%s244 + $0x10] sm:$0xff] %v903
        %936 = vst [vmem:[%s244 + $0x18] sm:$0xff] %v904
        %937 = vst [vmem:[%s244 + $0x20] sm:$0xff] %v905
        %938 = vst [vmem:[%s244 + $0x28] sm:$0xff] %v906
        %939 = vst [vmem:[%s244 + $0x30] sm:$0xff] %v907
        %940 = vst [vmem:[%s244 + $0x38] sm:$0xff] %v908
        %941 = vst [vmem:[%s244 + $0x40] sm:$0xff] %v909
        %942 = vst [vmem:[%s244 + $0x48] sm:$0xff] %v910
        %943 = vst [vmem:[%s244 + $0x50] sm:$0xff] %v911
        %944 = vst [vmem:[%s244 + $0x58] sm:$0xff] %v912
        %945 = vst [vmem:[%s244 + $0x60] sm:$0xff] %v913
        %946 = vst [vmem:[%s244 + $0x68] sm:$0xff] %v914
        %947 = vst [vmem:[%s244 + $0x70] sm:$0xff] %v915
        %948 = vst [vmem:[%s244 + $0x78] sm:$0xff] %v916
        %949 = vst [vmem:[%s244 + $0x80] sm:$0xff] %v917
        %950 = vst [vmem:[%s244 + $0x88] sm:$0xff] %v918
        %951 = vst [vmem:[%s244 + $0x90] sm:$0xff] %v919
        %952 = vst [vmem:[%s244 + $0x98] sm:$0xff] %v920
        %953 = vst [vmem:[%s244 + $0xa0] sm:$0xff] %v921
        %954 = vst [vmem:[%s244 + $0xa8] sm:$0xff] %v922
        %955 = vst [vmem:[%s244 + $0xb0] sm:$0xff] %v923
        %956 = vst [vmem:[%s244 + $0xb8] sm:$0xff] %v924
        %957 = vst [vmem:[%s244 + $0xc0] sm:$0xff] %v925
        %958 = vst [vmem:[%s244 + $0xc8] sm:$0xff] %v926
        %959 = vst [vmem:[%s244 + $0xd0] sm:$0xff] %v927
        %960 = vst [vmem:[%s244 + $0xd8] sm:$0xff] %v928
        %961 = vst [vmem:[%s244 + $0xe0] sm:$0xff] %v929
        %962 = vst [vmem:[%s244 + $0xe8] sm:$0xff] %v930
        %963 = vst [vmem:[%s244 + $0xf0] sm:$0xff] %v931
        %964 = vst [vmem:[%s244 + $0xf8] sm:$0xff] %v932
        %s965 = sand.u32 %s140, 1
        %s966 = scalar_lea.sflag [#allocation4], %s965
        %s967 = sand.u32 %s140, 1
        %s968 = smul.addr %s967, 256
        %s969 = scalar_lea.vmem [#allocation5], %s968
        // Predicated region
        $region45: #{tpu_custom_call.1} parent=39 // pred_check
          %p970 = pneg %p150
        $region46: #{tpu_custom_call.1} parent=39 // pred_check_branch
          %972 = sbr.rel (%p970) target = $region48
        $region47: #{tpu_custom_call.1} parent=39 // pred_region
          %974 = vsyncadd %s966, 0
          %s975 = smul.addr %s22, 32
          %s976 = smul.addr %s975, 8
          %s977 = scalar_lea.hbm %s5, %s976
          %s978 = sshll.u32 %s969, 4
          %s979 = int_to_ptr.vmem [resolvable:$true] %s978
          %s980 = sshll.u32 %s977, 4
          %s981 = int_to_ptr.hbm [resolvable:$true] %s980
          %986 = dma.vmem_to_hbm [thread:$0]  %s979, 4096, %s981, %s966, 256, 256, 16
        $region48: #{tpu_custom_call.1} parent=39 // pred_fallthru
          _
      $region40: #{tpu_custom_call.1} parent=5 // pred_fallthru
        _
      %p987 = scmp.le.s32.totalorder 2, %s17
      // Predicated region
      $region49: #{tpu_custom_call.1} parent=5 // pred_check
        %p988 = pneg %p987
      $region50: #{tpu_custom_call.1} parent=5 // pred_check_branch
        %990 = sbr.rel (%p988) target = $region52
      $region51: #{tpu_custom_call.1} parent=5 // pred_region
        %s991 = ssub.s32 %s17, 2
        // Predicated region
        $region53: #{tpu_custom_call.1} parent=51 // pred_check
          %p992 = pneg %p156
        $region54: #{tpu_custom_call.1} parent=51 // pred_check_branch
          %994 = sbr.rel (%p992) target = $region56
        $region55: #{tpu_custom_call.1} parent=51 // pred_region
          %s995 = sand.u32 %s141, 1
          %s996 = scalar_lea.sflag [#allocation4], %s995
          %s997 = sand.u32 %s141, 1
          %s998 = smul.addr %s997, 256
          %s999 = scalar_lea.vmem [#allocation5], %s998
          %1001 = dma.done %s996, 4096
        $region56: #{tpu_custom_call.1} parent=51 // pred_fallthru
          _
      $region52: #{tpu_custom_call.1} parent=5 // pred_fallthru
        _
    $region6: #{tpu_custom_call.1} parent=1 // loop_footer
      %s21 = sadd.s32 1, %s17
    $region7: #{tpu_custom_call.1} parent=1 // loop_footer_branch
      %16 = sbr.rel target = $region3
    $region8: #{tpu_custom_call.1} parent=1 // loop_exit
      _
    %1002 = vsyncpa [#allocation3], 1
    %s1003 = scalar_lea.sflag [#allocation3], 1
    %1004 = vsyncpa %s1003, 1
    %1005 = vsyncpa [#allocation4], 1
    %s1006 = scalar_lea.sflag [#allocation4], 1
    %1007 = vsyncpa %s1006, 1

</llo_original>
